<compile_context>
chip_gen: v7x
topology: tpu7x:2x2x1
jax: 0.10.0
libtpu: 0.0.40
codegen_flags: <defaults>
</compile_context>

<pallas_src>
import jax
import jax.numpy as jnp
from jax.experimental import pallas as pl
from jax.experimental.pallas import tpu as pltpu

LANES = 128


def _mse_partial_kernel(pred_ref, target_ref, out_ref):
    # out_ref is an (8, LANES) f32 partial-sum accumulator, resident across
    # the reduction ("arbitrary") grid axis.  Zero it on the first step.
    @pl.when(pl.program_id(1) == 0)
    def _():
        out_ref[...] = jnp.zeros_like(out_ref)

    d = pred_ref[...].astype(jnp.float32) - target_ref[...].astype(jnp.float32)
    dsq = d * d
    # Fold the tile's rows into vreg-shaped (8, LANES) partials: pure VPU
    # vector adds (the reshape respects (8,128) tiling, no data movement).
    out_ref[...] += jnp.sum(dsq.reshape(-1, 8, LANES), axis=0)


def mse_loss(pred, target, *, tile_rows=1024):
    """MSE loss: mean of squared differences over all elements."""
    assert pred.shape == target.shape, "pred/target shapes must match"
    n_elems = pred.size

    # Flattening a contiguous array is free; no padding copies are made.
    flat_p = pred.reshape(-1)
    flat_t = target.reshape(-1)

    tile_rows = max(8, (tile_rows // 8) * 8)          # keep multiple of 8
    rows = n_elems // LANES                           # full 128-lane rows
    tile_rows_eff = min(tile_rows, (rows // 8) * 8)   # shrink for tiny inputs

    total = jnp.float32(0.0)
    main_elems = 0

    if tile_rows_eff >= 8:
        n_tiles = rows // tile_rows_eff
        # Megacore split for v7x (2 TCs); harmless on v5e/v6e (1 TC).
        num_cores = 2 if (n_tiles >= 2 and n_tiles % 2 == 0) else 1
        steps = n_tiles // num_cores
        main_rows = num_cores * steps * tile_rows_eff
        main_elems = main_rows * LANES

        p2 = flat_p[:main_elems].reshape(main_rows, LANES)
        t2 = flat_t[:main_elems].reshape(main_rows, LANES)

        partials = pl.pallas_call(
            _mse_partial_kernel,
            out_shape=jax.ShapeDtypeStruct((num_cores, 8, LANES), jnp.float32),
            grid_spec=pltpu.PrefetchScalarGridSpec(
                num_scalar_prefetch=0,
                grid=(num_cores, steps),
                in_specs=[
                    pl.BlockSpec((tile_rows_eff, LANES),
                                 lambda g, k: (g * steps + k, 0)),
                    pl.BlockSpec((tile_rows_eff, LANES),
                                 lambda g, k: (g * steps + k, 0)),
                ],
                # Leading dim squeezed: kernel sees an (8, LANES) accumulator
                # slot per parallel core.
                out_specs=pl.BlockSpec((None, 8, LANES),
                                       lambda g, k: (g, 0, 0)),
            ),
            compiler_params=pltpu.CompilerParams(
                dimension_semantics=("parallel", "arbitrary"),
            ),
        )(p2, t2)

        total = total + jnp.sum(partials)

    # Tail (fewer than one tile of elements): plain JAX, negligible cost.
    if main_elems < n_elems:
        tp = flat_p[main_elems:].astype(jnp.float32)
        tt = flat_t[main_elems:].astype(jnp.float32)
        dt = tp - tt
        total = total + jnp.sum(dt * dt)

    return (total / jnp.float32(n_elems)).astype(jnp.float32)


if __name__ == "__main__":
    key = jax.random.PRNGKey(0)
    k1, k2 = jax.random.split(key)
    # Small NCHW-shaped inputs (batch=2, channels=4, spatial=16x16).
    pred = jax.random.normal(k1, (2, 4, 16, 16), dtype=jnp.float32)
    target = jax.random.normal(k2, (2, 4, 16, 16), dtype=jnp.float32)

    loss = mse_loss(pred, target)
    jax.block_until_ready(loss)

    # Sanity check against plain-JAX reference (same as torch nn.MSELoss mean).
    ref = jnp.mean((pred - target) ** 2)
    assert jnp.allclose(loss, ref, rtol=1e-5, atol=1e-6), (loss, ref)

    print("KERNEL_OK")
</pallas_src>

<mosaic_0001>
module attributes {stable_mosaic.version = 11 : i64} {
  func.func @_mse_partial_kernel(%arg0: i32, %arg1: i32, %arg2: memref<16x128xf32, #tpu.memory_space<vmem>>, %arg3: memref<16x128xf32, #tpu.memory_space<vmem>>, %arg4: memref<1x8x128xf32, #tpu.memory_space<vmem>>) attributes {dimension_semantics = [#tpu.dimension_semantics<parallel>, #tpu.dimension_semantics<arbitrary>], iteration_bounds = array<i64: 1, 1>, scalar_prefetch = 0 : i64, scratch_operands = 0 : i64, tpu.core_type = #tpu.core_type<tc>, window_params = [{transform_indices = @transform_0, window_bounds = array<i64: 16, 128>}, {transform_indices = @transform_1, window_bounds = array<i64: 16, 128>}, {transform_indices = @transform_2, window_bounds = array<i64: 1, 8, 128>}]} {
    %c0_i32 = arith.constant 0 : i32
    %0 = arith.cmpi eq, %arg1, %c0_i32 : i32
    %1 = arith.extui %0 : i1 to i32
    %c0_i32_0 = arith.constant 0 : i32
    %2 = arith.cmpi ne, %1, %c0_i32_0 : i32
    scf.if %2 {
      %cst_10 = arith.constant 0.000000e+00 : f32
      %15 = vector.broadcast %cst_10 : f32 to vector<8x128xf32>
      %c0_11 = arith.constant 0 : index
      %c0_12 = arith.constant 0 : index
      %c0_13 = arith.constant 0 : index
      %16 = vector.load %arg4[%c0_11, %c0_12, %c0_13] : memref<1x8x128xf32, #tpu.memory_space<vmem>>, vector<1x8x128xf32>
      %17 = vector.shape_cast %16 : vector<1x8x128xf32> to vector<8x128xf32>
      %18 = vector.shape_cast %15 : vector<8x128xf32> to vector<1x8x128xf32>
      tpu.vector_store %arg4[%c0_11, %c0_12, %c0_13], %18 {strides = array<i32>} : memref<1x8x128xf32, #tpu.memory_space<vmem>>, vector<1x8x128xf32>,
    } else {
    }
    %c0 = arith.constant 0 : index
    %c0_1 = arith.constant 0 : index
    %3 = vector.load %arg2[%c0, %c0_1] : memref<16x128xf32, #tpu.memory_space<vmem>>, vector<16x128xf32>
    %c0_2 = arith.constant 0 : index
    %c0_3 = arith.constant 0 : index
    %4 = vector.load %arg3[%c0_2, %c0_3] : memref<16x128xf32, #tpu.memory_space<vmem>>, vector<16x128xf32>
    %5 = arith.subf %3, %4 : vector<16x128xf32>
    %6 = arith.mulf %5, %5 : vector<16x128xf32>
    %c0_4 = arith.constant 0 : index
    %c0_5 = arith.constant 0 : index
    %c0_6 = arith.constant 0 : index
    %7 = vector.load %arg4[%c0_4, %c0_5, %c0_6] : memref<1x8x128xf32, #tpu.memory_space<vmem>>, vector<1x8x128xf32>
    %8 = vector.shape_cast %7 : vector<1x8x128xf32> to vector<8x128xf32>
    %9 = vector.shape_cast %6 : vector<16x128xf32> to vector<2x8x128xf32>
    %cst = arith.constant dense<0.000000e+00> : vector<8x128xf32>
    %10 = vector.multi_reduction <add>, %9, %cst [0] : vector<2x8x128xf32> to vector<8x128xf32>
    %11 = arith.addf %8, %10 : vector<8x128xf32>
    %c0_7 = arith.constant 0 : index
    %c0_8 = arith.constant 0 : index
    %c0_9 = arith.constant 0 : index
    %12 = vector.load %arg4[%c0_7, %c0_8, %c0_9] : memref<1x8x128xf32, #tpu.memory_space<vmem>>, vector<1x8x128xf32>
    %13 = vector.shape_cast %12 : vector<1x8x128xf32> to vector<8x128xf32>
    %14 = vector.shape_cast %11 : vector<8x128xf32> to vector<1x8x128xf32>
    tpu.vector_store %arg4[%c0_7, %c0_8, %c0_9], %14 {strides = array<i32>} : memref<1x8x128xf32, #tpu.memory_space<vmem>>, vector<1x8x128xf32>,
    return
  }
  func.func @transform_0(%arg0: i32, %arg1: i32) -> (i32, i32) {
    %c1_i32 = arith.constant 1 : i32
    %0 = arith.muli %arg0, %c1_i32 : i32
    %1 = arith.addi %0, %arg1 : i32
    %c0_i32 = arith.constant 0 : i32
    %c0_i32_0 = arith.constant 0 : i32
    return %1, %c0_i32 : i32, i32
  }
  func.func @transform_1(%arg0: i32, %arg1: i32) -> (i32, i32) {
    %c1_i32 = arith.constant 1 : i32
    %0 = arith.muli %arg0, %c1_i32 : i32
    %1 = arith.addi %0, %arg1 : i32
    %c0_i32 = arith.constant 0 : i32
    %c0_i32_0 = arith.constant 0 : i32
    return %1, %c0_i32 : i32, i32
  }
  func.func @transform_2(%arg0: i32, %arg1: i32) -> (i32, i32, i32) {
    %c0_i32 = arith.constant 0 : i32
    %c0_i32_0 = arith.constant 0 : i32
    %c0_i32_1 = arith.constant 0 : i32
    return %arg0, %c0_i32, %c0_i32_0 : i32, i32, i32
  }
}

</mosaic_0001>

<llo_original>
// kernel: tpu_custom_call.1
$region0: #{tpu_custom_call.1}
  #allocation0 [shape = 'u32[]', space=smem, size = 0x4, offset = 0x4, fixed_abs, tag = 'smem constant byte address 0x4 - core index']
  #allocation1 [shape = 'u32[144,128]{1,0:T(1,128)}', space=vmem, size = 0x12000, scoped, tag = 'internal scratch']
  %s0 = inlined_call_operand.hbm [shape: f32[16,128], index: 0, kind: input, shape index: {}]
  %s1 = inlined_call_operand.hbm [shape: f32[16,128], index: 1, kind: input, shape index: {}]
  %s2 = inlined_call_operand.hbm [shape: f32[1,8,128], index: 2, kind: output, shape index: {}]
  %s3 = sld [smem:[#allocation0]]
  $region30: #{tpu_custom_call.1} parent=0
    _
  %s5 = ssub.s32 1, %s3
  %s6 = scalar_select 0, %s5, %s3
  $region1: #{tpu_custom_call.1} parent=0
    #allocation2 [shape = 'u8[8192]{0}', space=vmem, size = 0x2000, scoped, tag = 'input window, operand 0, single buffered']
    #allocation3 [shape = 's32[1]{0}', space=sflag, size = 0x4, scoped, tag = 'scoped memory for tpu_custom_call.1']
    #allocation4 [shape = 's32[1]{0}', space=sflag, size = 0x4, scoped, tag = 'scoped memory for tpu_custom_call.1']
    #allocation5 [shape = 'u8[8192]{0}', space=vmem, size = 0x2000, scoped, tag = 'input window, operand 1, single buffered']
    #allocation6 [shape = 's32[1]{0}', space=sflag, size = 0x4, scoped, tag = 'scoped memory for tpu_custom_call.1']
    #allocation7 [shape = 'u8[4096]{0}', space=vmem, size = 0x1000, scoped, tag = 'output window, operand 0, single buffered']
    %7 = vsyncpa [#allocation3], 0
    %8 = vsyncpa [#allocation6], 0
    %9 = vsyncpa [#allocation4], 0
    // Predicated region
    $region2: #{tpu_custom_call.1} parent=1 // pred_check
      _
    $region3: #{tpu_custom_call.1} parent=1 // pred_check_branch
      %11 = sbr.rel (0) target = $region5
    $region4: #{tpu_custom_call.1} parent=1 // pred_region
      %s12 = sadd.s32 0, 0
      %s13 = smul.u32 2, %s12
      %s15 = ssub.s32 256, 256
      %16 = vsyncadd [#allocation3], %s15
      %s17 = smul.addr %s13, 128
      %s18 = scalar_lea.hbm %s0, %s17
      %s19 = sshll.u32 [#allocation2], 4
      %s20 = int_to_ptr.vmem [resolvable:$true] %s19
      %25 = dma.hbm_to_vmem [thread:$0]  %s18, 256, %s20, [#allocation3], 128, 128, 8
    $region5: #{tpu_custom_call.1} parent=1 // pred_fallthru
      _
    // Predicated region
    $region6: #{tpu_custom_call.1} parent=1 // pred_check
      _
    $region7: #{tpu_custom_call.1} parent=1 // pred_check_branch
      %27 = sbr.rel (0) target = $region9
    $region8: #{tpu_custom_call.1} parent=1 // pred_region
      %s28 = sadd.s32 0, 0
      %s29 = smul.u32 2, %s28
      %s31 = ssub.s32 256, 256
      %32 = vsyncadd [#allocation6], %s31
      %s33 = smul.addr %s29, 128
      %s34 = scalar_lea.hbm %s1, %s33
      %s35 = sshll.u32 [#allocation5], 4
      %s36 = int_to_ptr.vmem [resolvable:$true] %s35
      %41 = dma.hbm_to_vmem [thread:$0]  %s34, 256, %s36, [#allocation6], 128, 128, 8
    $region9: #{tpu_custom_call.1} parent=1 // pred_fallthru
      _
    // Predicated region
    $region10: #{tpu_custom_call.1} parent=1 // pred_check
      _
    $region11: #{tpu_custom_call.1} parent=1 // pred_check_branch
      %43 = sbr.rel (0) target = $region13
    $region12: #{tpu_custom_call.1} parent=1 // pred_region
      %44 = dma.done [#allocation3], 256
    $region13: #{tpu_custom_call.1} parent=1 // pred_fallthru
      _
    // Predicated region
    $region14: #{tpu_custom_call.1} parent=1 // pred_check
      _
    $region15: #{tpu_custom_call.1} parent=1 // pred_check_branch
      %46 = sbr.rel (0) target = $region17
    $region16: #{tpu_custom_call.1} parent=1 // pred_region
      %47 = dma.done [#allocation6], 256
    $region17: #{tpu_custom_call.1} parent=1 // pred_fallthru
      _
    %s48 = sadd.s32 0, 0
    %s49 = smul.u32 2, %s48
    %s50 = sadd.s32 0, 0
    %s51 = smul.u32 2, %s50
    %p52 = scmp.eq.s32.totalorder 0, 0
    // Predicated region
    $region18: #{tpu_custom_call.1} parent=1 // pred_check
      %p53 = pneg %p52
    $region19: #{tpu_custom_call.1} parent=1 // pred_check_branch
      %55 = sbr.rel (%p53) target = $region21
    $region20: #{tpu_custom_call.1} parent=1 // pred_region
      %56 = vst [vmem:[#allocation7] sm:$0xff] 0.0
    $region21: #{tpu_custom_call.1} parent=1 // pred_fallthru
      _
    %v57 = vld [vmem:[#allocation2] sm:$0xff]
    %v58 = vld [vmem:[#allocation2 + $0x8] sm:$0xff]
    %v59 = vld [vmem:[#allocation5] sm:$0xff]
    %v60 = vld [vmem:[#allocation5 + $0x8] sm:$0xff]
    %v61 = vsub.f32 %v57, %v59
    %v62 = vsub.f32 %v58, %v60
    %v63 = vmul.f32 %v61, %v61
    %v64 = vmul.f32 %v62, %v62
    %v65 = vld [vmem:[#allocation7] sm:$0xff]
    %v66 = vadd.f32 %v63, %v64
    %v67 = vadd.f32 %v65, %v66
    %68 = vst [vmem:[#allocation7] sm:$0xff] %v67
    // Predicated region
    $region22: #{tpu_custom_call.1} parent=1 // pred_check
      _
    $region23: #{tpu_custom_call.1} parent=1 // pred_check_branch
      %70 = sbr.rel (0) target = $region25
    $region24: #{tpu_custom_call.1} parent=1 // pred_region
      %s72 = ssub.s32 128, 128
      %73 = vsyncadd [#allocation4], %s72
      %s75 = sshll.u32 [#allocation7], 4
      %s76 = int_to_ptr.vmem [resolvable:$true] %s75
      %78 = dma.vmem_to_hbm [thread:$0]  %s76, 128, %s2, [#allocation4]
    $region25: #{tpu_custom_call.1} parent=1 // pred_fallthru
      _
    // Predicated region
    $region26: #{tpu_custom_call.1} parent=1 // pred_check
      _
    $region27: #{tpu_custom_call.1} parent=1 // pred_check_branch
      %80 = sbr.rel (0) target = $region29
    $region28: #{tpu_custom_call.1} parent=1 // pred_region
      %81 = dma.done [#allocation4], 128
    $region29: #{tpu_custom_call.1} parent=1 // pred_fallthru
      _
    %82 = vsyncpa [#allocation3], 1
    %83 = vsyncpa [#allocation6], 1
    %84 = vsyncpa [#allocation4], 1

</llo_original>
